<compile_context>
chip_gen: v7x
topology: tpu7x:2x2x1
jax: 0.10.0
libtpu: 0.0.40
codegen_flags: <defaults>
</compile_context>

<pallas_src>
import jax
import jax.numpy as jnp
from jax.experimental import pallas as pl
from jax.experimental.pallas import tpu as pltpu


def _lstm_cell_kernel(xh_ref, c_ref, w_ref, b_ref, hy_ref, cy_ref):
    # Single fused MXU matmul for this (batch-tile, hidden-slab):
    #   (tb, K) @ (K, 4*th) -> (tb, 4*th), f32 accumulation.
    gates = jnp.dot(xh_ref[...], w_ref[...],
                    preferred_element_type=jnp.float32) + b_ref[...]

    th = hy_ref.shape[1]
    # Gate blocks are contiguous per slab thanks to the wrapper's column
    # permutation: [i | f | g | o], each of width th (lane-aligned for th%128==0).
    i_t = jax.nn.sigmoid(gates[:, 0 * th:1 * th])
    f_t = jax.nn.sigmoid(gates[:, 1 * th:2 * th])
    g_t = jnp.tanh(gates[:, 2 * th:3 * th])
    o_t = jax.nn.sigmoid(gates[:, 3 * th:4 * th])

    cy = c_ref[...] * f_t + i_t * g_t
    hy = o_t * jnp.tanh(cy)

    cy_ref[...] = cy.astype(cy_ref.dtype)
    hy_ref[...] = hy.astype(hy_ref.dtype)


def _pick_tile(dim, align, cap):
    """Largest tile <= cap that is a multiple of `align` and divides `dim`.

    Falls back to the full dimension when `dim` is not aligned (a block equal
    to the full array dim is always legal, it just isn't lane/sublane dense).
    """
    if dim % align != 0:
        return dim
    t = min(cap, dim)
    t -= t % align
    while dim % t != 0:
        t -= align
    return t


def lstm_cell(x, hx, cx, w_xh, b_xh, w_hh, b_hh, *,
              compute_dtype=jnp.bfloat16):
    """Single LSTM cell step. Returns (hy, cy), each (B, H) float32."""
    B, input_size = x.shape
    H = hx.shape[1]
    K = input_size + H

    # Tile sizes: batch tile (sublane-aligned), hidden slab (lane-aligned).
    tb = _pick_tile(B, 8, 256)
    th = _pick_tile(H, 128, 512)
    n_b = B // tb
    n_h = H // th

    # --- Fuse the two matmuls and the two biases -----------------------------
    xh = jnp.concatenate([x, hx], axis=1).astype(compute_dtype)       # (B, K)
    w = jnp.concatenate([w_xh, w_hh], axis=0)                         # (K, 4H)
    b = (b_xh + b_hh).astype(jnp.float32).reshape(1, 4 * H)           # (1, 4H)

    # Permute the 4H columns so each hidden slab of width th has its four gate
    # blocks contiguous: new layout = [slab0:(i,f,g,o) | slab1:(i,f,g,o) | ...].
    w = (w.reshape(K, 4, n_h, th).transpose(0, 2, 1, 3)
           .reshape(K, 4 * H).astype(compute_dtype))
    b = b.reshape(1, 4, n_h, th).transpose(0, 2, 1, 3).reshape(1, 4 * H)

    cx = cx.astype(jnp.float32)

    # --- VMEM budget (per grid step, double-buffered) -------------------------
    per_step = (K * 4 * th * 2          # bf16 weight slab
                + tb * K * 2            # bf16 [x,h] tile
                + tb * th * 4           # f32 cx tile
                + 4 * th * 4            # f32 bias slab
                + 2 * tb * th * 4)      # f32 hy/cy tiles
    vmem_limit = int(min(max(2 * per_step + 8 * tb * 4 * th * 4 + (4 << 20),
                             16 << 20),
                         48 << 20))     # safe on v5e/v6e (128 MiB) and v7x (64 MiB)

    grid_spec = pltpu.PrefetchScalarGridSpec(
        num_scalar_prefetch=0,
        grid=(n_b, n_h),
        in_specs=[
            pl.BlockSpec((tb, K), lambda i, j: (i, 0)),        # [x, h]
            pl.BlockSpec((tb, th), lambda i, j: (i, j)),       # cx
            pl.BlockSpec((K, 4 * th), lambda i, j: (0, j)),    # fused weights
            pl.BlockSpec((1, 4 * th), lambda i, j: (0, j)),    # fused bias
        ],
        out_specs=[
            pl.BlockSpec((tb, th), lambda i, j: (i, j)),       # hy
            pl.BlockSpec((tb, th), lambda i, j: (i, j)),       # cy
        ],
    )

    hy, cy = pl.pallas_call(
        _lstm_cell_kernel,
        out_shape=(
            jax.ShapeDtypeStruct((B, H), jnp.float32),
            jax.ShapeDtypeStruct((B, H), jnp.float32),
        ),
        grid_spec=grid_spec,
        compiler_params=pltpu.CompilerParams(
            dimension_semantics=("parallel", "parallel"),
            vmem_limit_bytes=vmem_limit,
        ),
    )(xh, cx, w, b)
    # TODO(synk): if used recurrently, fold the timestep loop into the grid so
    # the fused weight slabs stay VMEM-resident across steps.
    return hy, cy


# ----------------------------- references ------------------------------------
def lstm_cell_ref_f32(x, hx, cx, w_xh, b_xh, w_hh, b_hh):
    """Pure-f32 JAX reference mirroring the PyTorch forward."""
    gates = x @ w_xh + b_xh + hx @ w_hh + b_hh
    H = hx.shape[1]
    i_t = jax.nn.sigmoid(gates[:, 0 * H:1 * H])
    f_t = jax.nn.sigmoid(gates[:, 1 * H:2 * H])
    g_t = jnp.tanh(gates[:, 2 * H:3 * H])
    o_t = jax.nn.sigmoid(gates[:, 3 * H:4 * H])
    cy = cx * f_t + i_t * g_t
    hy = o_t * jnp.tanh(cy)
    return hy, cy


def lstm_cell_ref_matched(x, hx, cx, w_xh, b_xh, w_hh, b_hh,
                          compute_dtype=jnp.bfloat16):
    """Reference with the same bf16 operand casts as the kernel."""
    xh = jnp.concatenate([x, hx], axis=1).astype(compute_dtype)
    w = jnp.concatenate([w_xh, w_hh], axis=0).astype(compute_dtype)
    gates = jnp.dot(xh, w, preferred_element_type=jnp.float32) + (b_xh + b_hh)
    H = hx.shape[1]
    i_t = jax.nn.sigmoid(gates[:, 0 * H:1 * H])
    f_t = jax.nn.sigmoid(gates[:, 1 * H:2 * H])
    g_t = jnp.tanh(gates[:, 2 * H:3 * H])
    o_t = jax.nn.sigmoid(gates[:, 3 * H:4 * H])
    cy = cx * f_t + i_t * g_t
    hy = o_t * jnp.tanh(cy)
    return hy, cy


if __name__ == "__main__":
    batch = 2
    input_size = 16
    hidden_size = 32

    key = jax.random.PRNGKey(0)
    kx, kh, kc, k1, k2, k3, k4 = jax.random.split(key, 7)

    x = jax.random.normal(kx, (batch, input_size), dtype=jnp.float32)
    hx = jax.random.normal(kh, (batch, hidden_size), dtype=jnp.float32)
    cx = jax.random.normal(kc, (batch, hidden_size), dtype=jnp.float32)

    # PyTorch nn.Linear-style init: U(-1/sqrt(fan_in), +1/sqrt(fan_in)).
    bound_xh = 1.0 / jnp.sqrt(jnp.float32(input_size))
    bound_hh = 1.0 / jnp.sqrt(jnp.float32(hidden_size))
    # weights stored pre-transposed: (in_features, 4*hidden)
    w_xh = jax.random.uniform(k1, (input_size, 4 * hidden_size),
                              minval=-bound_xh, maxval=bound_xh,
                              dtype=jnp.float32)
    b_xh = jax.random.uniform(k2, (4 * hidden_size,),
                              minval=-bound_xh, maxval=bound_xh,
                              dtype=jnp.float32)
    w_hh = jax.random.uniform(k3, (hidden_size, 4 * hidden_size),
                              minval=-bound_hh, maxval=bound_hh,
                              dtype=jnp.float32)
    b_hh = jax.random.uniform(k4, (4 * hidden_size,),
                              minval=-bound_hh, maxval=bound_hh,
                              dtype=jnp.float32)

    hy, cy = lstm_cell(x, hx, cx, w_xh, b_xh, w_hh, b_hh)
    jax.block_until_ready((hy, cy))

    # Check 1: against a reference using the same bf16 operand casts (tight).
    hy_m, cy_m = lstm_cell_ref_matched(x, hx, cx, w_xh, b_xh, w_hh, b_hh)
    assert jnp.allclose(hy, hy_m, atol=2e-3, rtol=2e-3)
    assert jnp.allclose(cy, cy_m, atol=2e-3, rtol=2e-3)

    # Check 2: against the pure-f32 PyTorch-equivalent reference (bf16 tolerance).
    hy_f, cy_f = lstm_cell_ref_f32(x, hx, cx, w_xh, b_xh, w_hh, b_hh)
    assert jnp.allclose(hy, hy_f, atol=5e-2, rtol=5e-2)
    assert jnp.allclose(cy, cy_f, atol=5e-2, rtol=5e-2)

    print("KERNEL_OK")
</pallas_src>

<mosaic_0001>
module attributes {stable_mosaic.version = 11 : i64} {
  func.func @_lstm_cell_kernel(%arg0: i32, %arg1: i32, %arg2: memref<2x48xbf16, #tpu.memory_space<vmem>>, %arg3: memref<2x32xf32, #tpu.memory_space<vmem>>, %arg4: memref<48x128xbf16, #tpu.memory_space<vmem>>, %arg5: memref<1x128xf32, #tpu.memory_space<vmem>>, %arg6: memref<2x32xf32, #tpu.memory_space<vmem>>, %arg7: memref<2x32xf32, #tpu.memory_space<vmem>>) attributes {dimension_semantics = [#tpu.dimension_semantics<parallel>, #tpu.dimension_semantics<parallel>], iteration_bounds = array<i64: 1, 1>, scalar_prefetch = 0 : i64, scratch_operands = 0 : i64, tpu.core_type = #tpu.core_type<tc>, window_params = [{transform_indices = @transform_0, window_bounds = array<i64: 2, 48>}, {transform_indices = @transform_1, window_bounds = array<i64: 2, 32>}, {transform_indices = @transform_2, window_bounds = array<i64: 48, 128>}, {transform_indices = @transform_3, window_bounds = array<i64: 1, 128>}, {transform_indices = @transform_4, window_bounds = array<i64: 2, 32>}, {transform_indices = @transform_5, window_bounds = array<i64: 2, 32>}]} {
    %c0 = arith.constant 0 : index
    %c0_0 = arith.constant 0 : index
    %0 = vector.load %arg2[%c0, %c0_0] : memref<2x48xbf16, #tpu.memory_space<vmem>>, vector<2x48xbf16>
    %c0_1 = arith.constant 0 : index
    %c0_2 = arith.constant 0 : index
    %1 = vector.load %arg4[%c0_1, %c0_2] : memref<48x128xbf16, #tpu.memory_space<vmem>>, vector<48x128xbf16>
    %cst = arith.constant dense<0.000000e+00> : vector<2x128xf32>
    %2 = tpu.matmul %0, %1, %cst {dimension_numbers = #tpu.dot_dimension_numbers<[1], [0], [0], [1], [0, 0, 1, 1], [], []>} : vector<2x48xbf16>, vector<48x128xbf16>, vector<2x128xf32> -> vector<2x128xf32>
    %c0_3 = arith.constant 0 : index
    %c0_4 = arith.constant 0 : index
    %3 = vector.load %arg5[%c0_3, %c0_4] : memref<1x128xf32, #tpu.memory_space<vmem>>, vector<1x128xf32>
    %4 = vector.broadcast %3 : vector<1x128xf32> to vector<2x128xf32>
    %5 = arith.addf %2, %4 : vector<2x128xf32>
    %6 = vector.extract_strided_slice %5 {offsets = [0, 0], sizes = [2, 32], strides = [1, 1]} : vector<2x128xf32> to vector<2x32xf32>
    %7 = arith.negf %6 : vector<2x32xf32>
    %8 = math.exp %7 : vector<2x32xf32>
    %cst_5 = arith.constant 1.000000e+00 : f32
    %9 = vector.broadcast %cst_5 : f32 to vector<2x32xf32>
    %10 = arith.addf %9, %8 : vector<2x32xf32>
    %11 = arith.divf %9, %10 : vector<2x32xf32>
    %12 = vector.extract_strided_slice %5 {offsets = [0, 32], sizes = [2, 32], strides = [1, 1]} : vector<2x128xf32> to vector<2x32xf32>
    %13 = arith.negf %12 : vector<2x32xf32>
    %14 = math.exp %13 : vector<2x32xf32>
    %cst_6 = arith.constant 1.000000e+00 : f32
    %15 = vector.broadcast %cst_6 : f32 to vector<2x32xf32>
    %16 = arith.addf %15, %14 : vector<2x32xf32>
    %17 = arith.divf %15, %16 : vector<2x32xf32>
    %18 = vector.extract_strided_slice %5 {offsets = [0, 64], sizes = [2, 32], strides = [1, 1]} : vector<2x128xf32> to vector<2x32xf32>
    %19 = math.tanh %18 : vector<2x32xf32>
    %20 = vector.extract_strided_slice %5 {offsets = [0, 96], sizes = [2, 32], strides = [1, 1]} : vector<2x128xf32> to vector<2x32xf32>
    %21 = arith.negf %20 : vector<2x32xf32>
    %22 = math.exp %21 : vector<2x32xf32>
    %cst_7 = arith.constant 1.000000e+00 : f32
    %23 = vector.broadcast %cst_7 : f32 to vector<2x32xf32>
    %24 = arith.addf %23, %22 : vector<2x32xf32>
    %25 = arith.divf %23, %24 : vector<2x32xf32>
    %c0_8 = arith.constant 0 : index
    %c0_9 = arith.constant 0 : index
    %26 = vector.load %arg3[%c0_8, %c0_9] : memref<2x32xf32, #tpu.memory_space<vmem>>, vector<2x32xf32>
    %27 = arith.mulf %26, %17 : vector<2x32xf32>
    %28 = arith.mulf %11, %19 : vector<2x32xf32>
    %29 = arith.addf %27, %28 : vector<2x32xf32>
    %30 = math.tanh %29 : vector<2x32xf32>
    %31 = arith.mulf %25, %30 : vector<2x32xf32>
    %c0_10 = arith.constant 0 : index
    %c0_11 = arith.constant 0 : index
    %32 = vector.load %arg7[%c0_10, %c0_11] : memref<2x32xf32, #tpu.memory_space<vmem>>, vector<2x32xf32>
    tpu.vector_store %arg7[%c0_10, %c0_11], %29 {strides = array<i32>} : memref<2x32xf32, #tpu.memory_space<vmem>>, vector<2x32xf32>,
    %c0_12 = arith.constant 0 : index
    %c0_13 = arith.constant 0 : index
    %33 = vector.load %arg6[%c0_12, %c0_13] : memref<2x32xf32, #tpu.memory_space<vmem>>, vector<2x32xf32>
    tpu.vector_store %arg6[%c0_12, %c0_13], %31 {strides = array<i32>} : memref<2x32xf32, #tpu.memory_space<vmem>>, vector<2x32xf32>,
    return
  }
  func.func @transform_0(%arg0: i32, %arg1: i32) -> (i32, i32) {
    %c0_i32 = arith.constant 0 : i32
    %c0_i32_0 = arith.constant 0 : i32
    return %arg0, %c0_i32 : i32, i32
  }
  func.func @transform_1(%arg0: i32, %arg1: i32) -> (i32, i32) {
    %c0_i32 = arith.constant 0 : i32
    return %arg0, %arg1 : i32, i32
  }
  func.func @transform_2(%arg0: i32, %arg1: i32) -> (i32, i32) {
    %c0_i32 = arith.constant 0 : i32
    %c0_i32_0 = arith.constant 0 : i32
    return %c0_i32, %arg1 : i32, i32
  }
  func.func @transform_3(%arg0: i32, %arg1: i32) -> (i32, i32) {
    %c0_i32 = arith.constant 0 : i32
    %c0_i32_0 = arith.constant 0 : i32
    return %c0_i32, %arg1 : i32, i32
  }
  func.func @transform_4(%arg0: i32, %arg1: i32) -> (i32, i32) {
    %c0_i32 = arith.constant 0 : i32
    return %arg0, %arg1 : i32, i32
  }
  func.func @transform_5(%arg0: i32, %arg1: i32) -> (i32, i32) {
    %c0_i32 = arith.constant 0 : i32
    return %arg0, %arg1 : i32, i32
  }
}

</mosaic_0001>

<llo_original>
// kernel: tpu_custom_call.1
$region0: #{tpu_custom_call.1}
  #allocation0 [shape = 'u32[]', space=smem, size = 0x4, offset = 0x4, fixed_abs, tag = 'smem constant byte address 0x4 - core index']
  #allocation1 [shape = 'u32[144,128]{1,0:T(1,128)}', space=vmem, size = 0x12000, scoped, tag = 'internal scratch']
  %s0 = inlined_call_operand.hbm [shape: bf16[2,48], index: 0, kind: input, shape index: {}]
  %s1 = inlined_call_operand.vmem [shape: f32[2,32], index: 1, kind: input, shape index: {}]
  %s2 = inlined_call_operand.hbm [shape: bf16[48,128], index: 2, kind: input, shape index: {}]
  %s3 = inlined_call_operand.vmem [shape: f32[1,128], index: 3, kind: input, shape index: {}]
  %s4 = inlined_call_operand.hbm [shape: f32[2,32], index: 4, kind: output, shape index: {0}]
  %s5 = inlined_call_operand.hbm [shape: f32[2,32], index: 5, kind: output, shape index: {1}]
  %6 = xla_tuple %s4, %s5
  %s7 = sld [smem:[#allocation0]]
  $region42: #{tpu_custom_call.1} parent=0
    _
  %s9 = ssub.s32 1, %s7
  %s10 = scalar_select 0, %s9, %s7
  $region1: #{tpu_custom_call.1} parent=0
    #allocation2 [shape = 'u8[512]{0}', space=vmem, size = 0x400, scoped, tag = 'input window, operand 0, single buffered']
    #allocation3 [shape = 's32[1]{0}', space=sflag, size = 0x4, scoped, tag = 'scoped memory for tpu_custom_call.1']
    #allocation4 [shape = 's32[1]{0}', space=sflag, size = 0x4, scoped, tag = 'scoped memory for tpu_custom_call.1']
    #allocation5 [shape = 'u8[12288]{0}', space=vmem, size = 0x3000, scoped, tag = 'input window, operand 2, single buffered']
    #allocation6 [shape = 's32[1]{0}', space=sflag, size = 0x4, scoped, tag = 'scoped memory for tpu_custom_call.1']
    #allocation7 [shape = 'u8[1024]{0}', space=vmem, size = 0x400, scoped, tag = 'output window, operand 0, single buffered']
    #allocation8 [shape = 'u8[1024]{0}', space=vmem, size = 0x400, scoped, tag = 'output window, operand 1, single buffered']
    #allocation9 [shape = 's32[1]{0}', space=sflag, size = 0x4, scoped, tag = 'scoped memory for tpu_custom_call.1']
    %11 = vsyncpa [#allocation3], 0
    %12 = vsyncpa [#allocation6], 0
    %13 = vsyncpa [#allocation4], 0
    %14 = vsyncpa [#allocation9], 0
    // Predicated region
    $region2: #{tpu_custom_call.1} parent=1 // pred_check
      _
    $region3: #{tpu_custom_call.1} parent=1 // pred_check_branch
      %16 = sbr.rel (0) target = $region5
    $region4: #{tpu_custom_call.1} parent=1 // pred_region
      %s18 = ssub.s32 16, 16
      %19 = vsyncadd [#allocation3], %s18
      %s21 = sshll.u32 [#allocation2], 4
      %s22 = int_to_ptr.vmem [resolvable:$true] %s21
      %24 = dma.hbm_to_vmem [thread:$0]  %s0, 16, %s22, [#allocation3]
    $region5: #{tpu_custom_call.1} parent=1 // pred_fallthru
      _
    // Predicated region
    $region6: #{tpu_custom_call.1} parent=1 // pred_check
      _
    $region7: #{tpu_custom_call.1} parent=1 // pred_check_branch
      %26 = sbr.rel (0) target = $region9
    $region8: #{tpu_custom_call.1} parent=1 // pred_region
      _
    $region9: #{tpu_custom_call.1} parent=1 // pred_fallthru
      _
    // Predicated region
    $region10: #{tpu_custom_call.1} parent=1 // pred_check
      _
    $region11: #{tpu_custom_call.1} parent=1 // pred_check_branch
      %28 = sbr.rel (0) target = $region13
    $region12: #{tpu_custom_call.1} parent=1 // pred_region
      %s30 = ssub.s32 384, 384
      %31 = vsyncadd [#allocation6], %s30
      %s32 = sshll.u32 [#allocation5], 4
      %s33 = int_to_ptr.vmem [resolvable:$true] %s32
      %38 = dma.hbm_to_vmem [thread:$0]  %s2, 384, %s33, [#allocation6], 64, 64, 4
    $region13: #{tpu_custom_call.1} parent=1 // pred_fallthru
      _
    // Predicated region
    $region14: #{tpu_custom_call.1} parent=1 // pred_check
      _
    $region15: #{tpu_custom_call.1} parent=1 // pred_check_branch
      %40 = sbr.rel (0) target = $region17
    $region16: #{tpu_custom_call.1} parent=1 // pred_region
      _
    $region17: #{tpu_custom_call.1} parent=1 // pred_fallthru
      _
    // Predicated region
    $region18: #{tpu_custom_call.1} parent=1 // pred_check
      _
    $region19: #{tpu_custom_call.1} parent=1 // pred_check_branch
      %42 = sbr.rel (0) target = $region21
    $region20: #{tpu_custom_call.1} parent=1 // pred_region
      %43 = dma.done [#allocation3], 16
    $region21: #{tpu_custom_call.1} parent=1 // pred_fallthru
      _
    // Predicated region
    $region22: #{tpu_custom_call.1} parent=1 // pred_check
      _
    $region23: #{tpu_custom_call.1} parent=1 // pred_check_branch
      %45 = sbr.rel (0) target = $region25
    $region24: #{tpu_custom_call.1} parent=1 // pred_region
      %46 = dma.done [#allocation6], 384
    $region25: #{tpu_custom_call.1} parent=1 // pred_fallthru
      _
    %v48 = vld [vmem:[#allocation2] sm:$0x1]
    %v49 = vld [vmem:[#allocation5] sm:$0xf]
    %v50 = vld [vmem:[#allocation5 + $0x4] sm:$0xf]
    %v51 = vld [vmem:[#allocation5 + $0x8] sm:$0xf]
    %v52 = vld [vmem:[#allocation5 + $0xc] sm:$0xf]
    %v53 = vld [vmem:[#allocation5 + $0x10] sm:$0xf]
    %v54 = vld [vmem:[#allocation5 + $0x14] sm:$0xf]
    %v55 = vld [vmem:[%s3] sm:$0x1]
    %v57 = vlaneseq
    %v58 = vshrl.u32 %v57, 7
    %v59 = vsub.s32 0, %v58
    %v60 = vrot.slane %v55, %v59
    %v68 = vunpack.c.l.b16 %v49
    %v69 = vunpack.c.l.b16 %v50
    %v70 = vunpack.c.l.b16 %v51
    %v71 = vunpack.c.l.b16 %v52
    %v72 = vunpack.c.l.b16 %v53
    %v73 = vunpack.c.l.b16 %v54
    %v74 = vpack.c.b16 %v69, %v68
    %v75 = vpack.c.b16 %v71, %v70
    %v76 = vpack.c.b16 %v73, %v72
    %vm80 = vcmask 392192
    %v82 = vsel %vm80, %v48, 0
    %84 = vmatprep.subr.bf16.mxu0 0
    %85 = vmatpush1.bf16.msra.mxu0 %v74
    %86 = vmatprep.subr.bf16.mxu0 0
    %87 = vmatpush1.bf16.msra.mxu0 %v75
    %88 = vmatprep.subr.bf16.mxu0 0
    %89 = vmatpush1.bf16.msra.mxu0 %v76
    %90 = vmatprep.subr.bf16.mxu0 0
    %91 = vmatpush1.bf16.msra.mxu0 0
    %92 = vmatprep.subr.bf16.mxu0 0
    %93 = vmatpush1.bf16.msra.mxu0 0
    %94 = vmatprep.subr.bf16.mxu0 0
    %95 = vmatpush1.bf16.msra.mxu0 0
    %96 = vmatprep.subr.bf16.mxu0 0
    %97 = vmatpush1.bf16.msra.mxu0 0
    %98 = vmatprep.subr.bf16.mxu0 0
    %99 = vmatpush1.bf16.msra.mxu0 0
    %100 = vmatprep.subr.bf16.mxu0 0
    %101 = vmatpush1.bf16.msra.mxu0 0
    %102 = vmatprep.subr.bf16.mxu0 0
    %103 = vmatpush1.bf16.msra.mxu0 0
    %104 = vmatprep.subr.bf16.mxu0 0
    %105 = vmatpush1.bf16.msra.mxu0 0
    %106 = vmatprep.subr.bf16.mxu0 0
    %107 = vmatpush1.bf16.msra.mxu0 0
    %108 = vmatprep.subr.bf16.mxu0 0
    %109 = vmatpush1.bf16.msra.mxu0 0
    %110 = vmatprep.subr.bf16.mxu0 0
    %111 = vmatpush1.bf16.msra.mxu0 0
    %112 = vmatprep.subr.bf16.mxu0 0
    %113 = vmatpush1.bf16.msra.mxu0 0
    %114 = vmatprep.subr.bf16.mxu0 0
    %115 = vmatpush1.bf16.msra.mxu0 0
    %116 = vmatprep.mubr.bf16.mxu0 0
    %117 = vmatmul.mubr.bf16.gmra.mrb[0].mxu0 %v82
    %v118 = vpop.f32.mrb[0].mxu0
    %v119 = vadd.f32 %v60, %v118
    %v120 = vpop.f32.mrb[0].mxu0
    %v121 = vpop.f32.mrb[0].mxu0
    %v122 = vpop.f32.mrb[0].mxu0
    %123 = vdwg.mxu0
    %v124 = vxor.u32 %v119, 2147483648
    %v125 = vmul.f32 %v124, 1.442695
    %v126 = vpow.pop %v125
    %v127 = vadd.f32 %v126, 1.0
    %v128 = vrcp.pop %v127
    %v129 = vmul.f32 1.0, %v128
    %v130 = vtanh.pop %v119
    %v131 = vld [vmem:[%s1] sm:$0x3]
    %133 = vrot.lane.b32.xlu0 %v129, 96
    %v134 = vpop.permute.xlu0 %133
    %v136 = vmul.f32 %v131, %v134
    %138 = vrot.lane.b32.xlu0 %v130, 64
    %v139 = vpop.permute.xlu0 %138
    %v141 = vmul.f32 %v129, %v139
    %v142 = vadd.f32 %v136, %v141
    %v143 = vtanh.pop %v142
    %145 = vrot.lane.b32.xlu0 %v143, 96
    %v146 = vpop.permute.xlu0 %145
    %v148 = vmul.f32 %v129, %v146
    %vm149 = vcmask 254976
    %150 = vst.msk [vmem:[#allocation8] sm:$0x3] %vm149, %v142
    %152 = vrot.lane.b32.xlu0 %v148, 32
    %v153 = vpop.permute.xlu0 %152
    %155 = vst.msk [vmem:[#allocation7] sm:$0x3] %vm149, %v153
    // Predicated region
    $region26: #{tpu_custom_call.1} parent=1 // pred_check
      _
    $region27: #{tpu_custom_call.1} parent=1 // pred_check_branch
      %157 = sbr.rel (0) target = $region29
    $region28: #{tpu_custom_call.1} parent=1 // pred_region
      %s159 = ssub.s32 32, 32
      %160 = vsyncadd [#allocation4], %s159
      %s162 = sshll.u32 [#allocation7], 4
      %s163 = int_to_ptr.vmem [resolvable:$true] %s162
      %165 = dma.vmem_to_hbm [thread:$0]  %s163, 32, %s4, [#allocation4]
    $region29: #{tpu_custom_call.1} parent=1 // pred_fallthru
      _
    // Predicated region
    $region30: #{tpu_custom_call.1} parent=1 // pred_check
      _
    $region31: #{tpu_custom_call.1} parent=1 // pred_check_branch
      %167 = sbr.rel (0) target = $region33
    $region32: #{tpu_custom_call.1} parent=1 // pred_region
      %s169 = ssub.s32 32, 32
      %170 = vsyncadd [#allocation9], %s169
      %s172 = sshll.u32 [#allocation8], 4
      %s173 = int_to_ptr.vmem [resolvable:$true] %s172
      %175 = dma.vmem_to_hbm [thread:$0]  %s173, 32, %s5, [#allocation9]
    $region33: #{tpu_custom_call.1} parent=1 // pred_fallthru
      _
    // Predicated region
    $region34: #{tpu_custom_call.1} parent=1 // pred_check
      _
    $region35: #{tpu_custom_call.1} parent=1 // pred_check_branch
      %177 = sbr.rel (0) target = $region37
    $region36: #{tpu_custom_call.1} parent=1 // pred_region
      %178 = dma.done [#allocation4], 32
    $region37: #{tpu_custom_call.1} parent=1 // pred_fallthru
      _
    // Predicated region
    $region38: #{tpu_custom_call.1} parent=1 // pred_check
      _
    $region39: #{tpu_custom_call.1} parent=1 // pred_check_branch
      %180 = sbr.rel (0) target = $region41
    $region40: #{tpu_custom_call.1} parent=1 // pred_region
      %181 = dma.done [#allocation9], 32
    $region41: #{tpu_custom_call.1} parent=1 // pred_fallthru
      _
    %182 = vsyncpa [#allocation3], 1
    %183 = vsyncpa [#allocation6], 1
    %184 = vsyncpa [#allocation4], 1
    %185 = vsyncpa [#allocation9], 1

</llo_original>
